<compile_context>
chip_gen: v7x
topology: tpu7x:2x2x1
jax: 0.10.0
libtpu: 0.0.40
codegen_flags: <defaults>
</compile_context>

<pallas_src>
import functools

import jax
import jax.numpy as jnp
from jax.experimental import pallas as pl
from jax.experimental.pallas import tpu as pltpu


def _round_up(x, m):
    return ((x + m - 1) // m) * m


def _node_decoder_kernel(q_ref, zt_ref, out_ref, *, epilogue_dtype):
    # q_ref  : [tm, H]  0.5 * (z_author[input_nodes] @ W.T + b) tile (over M)
    # zt_ref : [H, tn]  z_author.T tile (over N), lane-dense & MXU-native
    # out_ref: [tm, tn] sigmoid tile
    s = jnp.dot(q_ref[...], zt_ref[...], preferred_element_type=jnp.float32)
    # sigmoid(x) = 0.5 * tanh(x/2) + 0.5 ; the inner 0.5 is folded into q in
    # the wrapper, so here it is one EUP tanh + one FMA per element.
    half = jnp.asarray(0.5, epilogue_dtype)
    t = jnp.tanh(s.astype(epilogue_dtype))
    out_ref[...] = (half * t + half).astype(out_ref.dtype)


def _pick_epilogue_dtype(out_dtype):
    # bf16 epilogue only where it pays AND the bf16 vector path exists:
    # needed on v7x to reach the HBM roofline; keep f32 elsewhere (v5e has no
    # bf16 VPU/EUP; v6e f32 already has slack).
    try:
        kind = jax.devices()[0].device_kind.lower()
    except Exception:
        return jnp.float32
    if jnp.dtype(out_dtype) == jnp.dtype(jnp.bfloat16) and ("v7" in kind or "7x" in kind):
        return jnp.bfloat16
    return jnp.float32


def node_decoder(z_author, input_nodes, w, b, *, tm=None, tn=None,
                 compute_dtype=jnp.bfloat16, out_dtype=jnp.bfloat16,
                 epilogue_dtype=None):
    """z_author: [N, H], input_nodes: [M] int32, w: [H, H], b: [H].

    Returns sigmoid((z_author[input_nodes] @ w.T + b) @ z_author.T) as [M, N]
    in `out_dtype`.  Pass compute_dtype=out_dtype=jnp.float32 for numerics
    faithful (to f32 rounding) to the PyTorch module.
    """
    N, H = z_author.shape
    M = input_nodes.shape[0]

    # --- Glue (plain XLA), all O(M*H) / O(N*H) << O(M*N):
    # gather + hoisted Linear projection, with the sigmoid's inner 0.5 folded
    # into the [H, H] weights (one-time work, removes a per-output multiply).
    # NOTE: jnp.take clamps out-of-range indices (PyTorch indexing would raise).
    z_input = jnp.take(z_author, input_nodes, axis=0)                  # [M, H]
    q = (z_input @ (0.5 * w).T + 0.5 * b[None, :]).astype(compute_dtype)
    z_all_t = z_author.T.astype(compute_dtype)                         # [H, N]

    # --- Lane-dense tiles; ragged edges handled by the cdiv grid (Pallas masks
    # the out-of-bounds lanes of edge blocks on store; no reduction over the
    # padded region exists, so garbage in padded input lanes is harmless).
    if tm is None:
        tm = min(1024, _round_up(M, 16))
    if tn is None:
        tn = min(2048, _round_up(N, 128))
    if epilogue_dtype is None:
        epilogue_dtype = _pick_epilogue_dtype(out_dtype)

    grid = (pl.cdiv(M, tm), pl.cdiv(N, tn))
    kernel = functools.partial(_node_decoder_kernel, epilogue_dtype=epilogue_dtype)

    return pl.pallas_call(
        kernel,
        out_shape=jax.ShapeDtypeStruct((M, N), out_dtype),
        grid_spec=pltpu.PrefetchScalarGridSpec(
            num_scalar_prefetch=0,
            grid=grid,
            in_specs=[
                pl.BlockSpec((tm, H), lambda i, j: (i, 0)),   # q tile (resident over j)
                pl.BlockSpec((H, tn), lambda i, j: (0, j)),   # z^T tile, lane-dense
            ],
            out_specs=pl.BlockSpec((tm, tn), lambda i, j: (i, j)),
        ),
        compiler_params=pltpu.CompilerParams(
            dimension_semantics=("parallel", "parallel"),
            vmem_limit_bytes=32 * 1024 * 1024),
    )(q, z_all_t)


def node_decoder_ref(z_author, input_nodes, w, b):
    z_input = z_author[input_nodes]
    scores = (z_input @ w.T + b) @ z_author.T
    return jax.nn.sigmoid(scores)


if __name__ == "__main__":
    key = jax.random.PRNGKey(0)
    k_z, k_w, k_b, k_idx = jax.random.split(key, 4)

    # ---------- small case (matches the module's toy scale) ----------
    N, H, M = 64, 32, 8   # num author nodes, hidden_channels, num input nodes
    z_author = jax.random.normal(k_z, (N, H), dtype=jnp.float32)
    w = jax.random.normal(k_w, (H, H), dtype=jnp.float32) * (1.0 / jnp.sqrt(H))
    b = jax.random.normal(k_b, (H,), dtype=jnp.float32) * 0.1
    input_nodes = jax.random.randint(k_idx, (M,), 0, N, dtype=jnp.int32)

    ref = node_decoder_ref(z_author, input_nodes, w, b)

    # f32 path: tight tolerance (exact semantics of the PyTorch module).
    out_f32 = node_decoder(z_author, input_nodes, w, b,
                           compute_dtype=jnp.float32, out_dtype=jnp.float32,
                           epilogue_dtype=jnp.float32)
    out_f32 = jax.block_until_ready(out_f32)
    assert out_f32.shape == (M, N)
    assert jnp.allclose(out_f32, ref, atol=1e-5, rtol=1e-5), "f32 mismatch"

    # bf16 fast path (default): looser tolerance, intentional numerics change.
    out_bf16 = node_decoder(z_author, input_nodes, w, b)
    out_bf16 = jax.block_until_ready(out_bf16)
    assert out_bf16.shape == (M, N)
    assert jnp.allclose(out_bf16.astype(jnp.float32), ref, atol=3e-2), \
        "bf16 mismatch"

    # ---------- ragged, multi-tile case (exercises masked edge blocks) ----------
    N2, M2 = 1300, 200
    k_z2, k_idx2 = jax.random.split(jax.random.PRNGKey(1), 2)
    z_author2 = jax.random.normal(k_z2, (N2, H), dtype=jnp.float32)
    input_nodes2 = jax.random.randint(k_idx2, (M2,), 0, N2, dtype=jnp.int32)

    ref2 = node_decoder_ref(z_author2, input_nodes2, w, b)

    out2_f32 = node_decoder(z_author2, input_nodes2, w, b,
                            compute_dtype=jnp.float32, out_dtype=jnp.float32,
                            epilogue_dtype=jnp.float32)
    out2_f32 = jax.block_until_ready(out2_f32)
    assert out2_f32.shape == (M2, N2)
    assert jnp.allclose(out2_f32, ref2, atol=1e-5, rtol=1e-5), "f32 mismatch (large)"

    out2_bf16 = node_decoder(z_author2, input_nodes2, w, b)
    out2_bf16 = jax.block_until_ready(out2_bf16)
    assert out2_bf16.shape == (M2, N2)
    assert jnp.allclose(out2_bf16.astype(jnp.float32), ref2, atol=3e-2), \
        "bf16 mismatch (large)"

    # Also exercise an explicit multi-tile grid on the large case.
    out2_tiled = node_decoder(z_author2, input_nodes2, w, b, tm=128, tn=512)
    out2_tiled = jax.block_until_ready(out2_tiled)
    assert out2_tiled.shape == (M2, N2)
    assert jnp.allclose(out2_tiled.astype(jnp.float32), ref2, atol=3e-2), \
        "bf16 mismatch (tiled)"

    print("KERNEL_OK")
</pallas_src>

<mosaic_0001>
module attributes {stable_mosaic.version = 11 : i64} {
  func.func @_node_decoder_kernel(%arg0: i32, %arg1: i32, %arg2: memref<16x32xf32, #tpu.memory_space<vmem>>, %arg3: memref<32x128xf32, #tpu.memory_space<vmem>>, %arg4: memref<16x128xf32, #tpu.memory_space<vmem>>) attributes {dimension_semantics = [#tpu.dimension_semantics<parallel>, #tpu.dimension_semantics<parallel>], iteration_bounds = array<i64: 1, 1>, scalar_prefetch = 0 : i64, scratch_operands = 0 : i64, tpu.core_type = #tpu.core_type<tc>, window_params = [{transform_indices = @transform_0, window_bounds = array<i64: 16, 32>}, {transform_indices = @transform_1, window_bounds = array<i64: 32, 128>}, {transform_indices = @transform_2, window_bounds = array<i64: 16, 128>}]} {
    %c0 = arith.constant 0 : index
    %c0_0 = arith.constant 0 : index
    %0 = vector.load %arg2[%c0, %c0_0] : memref<16x32xf32, #tpu.memory_space<vmem>>, vector<16x32xf32>
    %c0_1 = arith.constant 0 : index
    %c0_2 = arith.constant 0 : index
    %1 = vector.load %arg3[%c0_1, %c0_2] : memref<32x128xf32, #tpu.memory_space<vmem>>, vector<32x128xf32>
    %cst = arith.constant dense<0.000000e+00> : vector<16x128xf32>
    %2 = tpu.matmul %0, %1, %cst {dimension_numbers = #tpu.dot_dimension_numbers<[1], [0], [0], [1], [0, 0, 1, 1], [], []>} : vector<16x32xf32>, vector<32x128xf32>, vector<16x128xf32> -> vector<16x128xf32>
    %3 = math.tanh %2 : vector<16x128xf32>
    %cst_3 = arith.constant 5.000000e-01 : f32
    %4 = vector.broadcast %cst_3 : f32 to vector<16x128xf32>
    %5 = arith.mulf %4, %3 : vector<16x128xf32>
    %cst_4 = arith.constant 5.000000e-01 : f32
    %6 = vector.broadcast %cst_4 : f32 to vector<16x128xf32>
    %7 = arith.addf %5, %6 : vector<16x128xf32>
    %c0_5 = arith.constant 0 : index
    %c0_6 = arith.constant 0 : index
    %8 = vector.load %arg4[%c0_5, %c0_6] : memref<16x128xf32, #tpu.memory_space<vmem>>, vector<16x128xf32>
    tpu.vector_store %arg4[%c0_5, %c0_6], %7 {strides = array<i32>} : memref<16x128xf32, #tpu.memory_space<vmem>>, vector<16x128xf32>,
    return
  }
  func.func @transform_0(%arg0: i32, %arg1: i32) -> (i32, i32) {
    %c0_i32 = arith.constant 0 : i32
    %c0_i32_0 = arith.constant 0 : i32
    return %arg0, %c0_i32 : i32, i32
  }
  func.func @transform_1(%arg0: i32, %arg1: i32) -> (i32, i32) {
    %c0_i32 = arith.constant 0 : i32
    %c0_i32_0 = arith.constant 0 : i32
    return %c0_i32, %arg1 : i32, i32
  }
  func.func @transform_2(%arg0: i32, %arg1: i32) -> (i32, i32) {
    %c0_i32 = arith.constant 0 : i32
    return %arg0, %arg1 : i32, i32
  }
}

</mosaic_0001>

<llo_original>
// kernel: tpu_custom_call.1
$region0: #{tpu_custom_call.1}
  #allocation0 [shape = 'u32[]', space=smem, size = 0x4, offset = 0x4, fixed_abs, tag = 'smem constant byte address 0x4 - core index']
  #allocation1 [shape = 'u32[144,128]{1,0:T(1,128)}', space=vmem, size = 0x12000, scoped, tag = 'internal scratch']
  %s0 = inlined_call_operand.hbm [shape: f32[8,32], index: 0, kind: input, shape index: {}]
  %s1 = inlined_call_operand.hbm [shape: f32[32,64], index: 1, kind: input, shape index: {}]
  %s2 = inlined_call_operand.hbm [shape: f32[8,64], index: 2, kind: output, shape index: {}]
  %s3 = sld [smem:[#allocation0]]
  $region26: #{tpu_custom_call.1} parent=0
    _
  %s5 = ssub.s32 1, %s3
  %s6 = scalar_select 0, %s5, %s3
  $region1: #{tpu_custom_call.1} parent=0
    #allocation2 [shape = 'u8[8192]{0}', space=vmem, size = 0x2000, scoped, tag = 'input window, operand 0, single buffered']
    #allocation3 [shape = 's32[1]{0}', space=sflag, size = 0x4, scoped, tag = 'scoped memory for tpu_custom_call.1']
    #allocation4 [shape = 's32[1]{0}', space=sflag, size = 0x4, scoped, tag = 'scoped memory for tpu_custom_call.1']
    #allocation5 [shape = 'u8[16384]{0}', space=vmem, size = 0x4000, scoped, tag = 'input window, operand 1, single buffered']
    #allocation6 [shape = 's32[1]{0}', space=sflag, size = 0x4, scoped, tag = 'scoped memory for tpu_custom_call.1']
    #allocation7 [shape = 'u8[8192]{0}', space=vmem, size = 0x2000, scoped, tag = 'output window, operand 0, single buffered']
    %7 = vsyncpa [#allocation3], 0
    %8 = vsyncpa [#allocation6], 0
    %9 = vsyncpa [#allocation4], 0
    // Predicated region
    $region2: #{tpu_custom_call.1} parent=1 // pred_check
      _
    $region3: #{tpu_custom_call.1} parent=1 // pred_check_branch
      %11 = sbr.rel (0) target = $region5
    $region4: #{tpu_custom_call.1} parent=1 // pred_region
      %s13 = ssub.s32 256, 128
      %14 = vsyncadd [#allocation3], %s13
      %s15 = sshll.u32 [#allocation2], 4
      %s16 = int_to_ptr.vmem [resolvable:$true] %s15
      %21 = dma.hbm_to_vmem [thread:$0]  %s0, 128, %s16, [#allocation3], 128, 128, 8
    $region5: #{tpu_custom_call.1} parent=1 // pred_fallthru
      _
    // Predicated region
    $region6: #{tpu_custom_call.1} parent=1 // pred_check
      _
    $region7: #{tpu_custom_call.1} parent=1 // pred_check_branch
      %23 = sbr.rel (0) target = $region9
    $region8: #{tpu_custom_call.1} parent=1 // pred_region
      %s25 = ssub.s32 512, 512
      %26 = vsyncadd [#allocation6], %s25
      %s27 = sshll.u32 [#allocation5], 4
      %s28 = int_to_ptr.vmem [resolvable:$true] %s27
      %33 = dma.hbm_to_vmem [thread:$0]  %s1, 512, %s28, [#allocation6], 128, 128, 8
    $region9: #{tpu_custom_call.1} parent=1 // pred_fallthru
      _
    // Predicated region
    $region10: #{tpu_custom_call.1} parent=1 // pred_check
      _
    $region11: #{tpu_custom_call.1} parent=1 // pred_check_branch
      %35 = sbr.rel (0) target = $region13
    $region12: #{tpu_custom_call.1} parent=1 // pred_region
      %36 = dma.done [#allocation3], 256
    $region13: #{tpu_custom_call.1} parent=1 // pred_fallthru
      _
    // Predicated region
    $region14: #{tpu_custom_call.1} parent=1 // pred_check
      _
    $region15: #{tpu_custom_call.1} parent=1 // pred_check_branch
      %38 = sbr.rel (0) target = $region17
    $region16: #{tpu_custom_call.1} parent=1 // pred_region
      %39 = dma.done [#allocation6], 512
    $region17: #{tpu_custom_call.1} parent=1 // pred_fallthru
      _
    %v40 = vld [vmem:[#allocation2] sm:$0xff]
    %v41 = vld [vmem:[#allocation2 + $0x8] sm:$0xff]
    %v42 = vld [vmem:[#allocation5] sm:$0xff]
    %v43 = vld [vmem:[#allocation5 + $0x8] sm:$0xff]
    %v44 = vld [vmem:[#allocation5 + $0x10] sm:$0xff]
    %v45 = vld [vmem:[#allocation5 + $0x18] sm:$0xff]
    %vm46 = vcmask 261120
    %v48 = vsel %vm46, %v40, 0
    %v51 = vsel %vm46, %v41, 0
    %53 = vmatprep.subr.mxu0 0.0
    %54 = vmatpush1.msra.mxu0 %v42
    %55 = vmatprep.subr.mxu0 0.0
    %56 = vmatpush1.msra.mxu0 %v43
    %57 = vmatprep.subr.mxu0 0.0
    %58 = vmatpush1.msra.mxu0 %v44
    %59 = vmatprep.subr.mxu0 0.0
    %60 = vmatpush1.msra.mxu0 %v45
    %61 = vmatprep.subr.mxu0 0.0
    %62 = vmatpush1.msra.mxu0 0.0
    %63 = vmatprep.subr.mxu0 0.0
    %64 = vmatpush1.msra.mxu0 0.0
    %65 = vmatprep.subr.mxu0 0.0
    %66 = vmatpush1.msra.mxu0 0.0
    %67 = vmatprep.subr.mxu0 0.0
    %68 = vmatpush1.msra.mxu0 0.0
    %69 = vmatprep.subr.mxu0 0.0
    %70 = vmatpush1.msra.mxu0 0.0
    %71 = vmatprep.subr.mxu0 0.0
    %72 = vmatpush1.msra.mxu0 0.0
    %73 = vmatprep.subr.mxu0 0.0
    %74 = vmatpush1.msra.mxu0 0.0
    %75 = vmatprep.subr.mxu0 0.0
    %76 = vmatpush1.msra.mxu0 0.0
    %77 = vmatprep.subr.mxu0 0.0
    %78 = vmatpush1.msra.mxu0 0.0
    %79 = vmatprep.subr.mxu0 0.0
    %80 = vmatpush1.msra.mxu0 0.0
    %81 = vmatprep.subr.mxu0 0.0
    %82 = vmatpush1.msra.mxu0 0.0
    %83 = vmatprep.subr.mxu0 0.0
    %84 = vmatpush1.msra.mxu0 0.0
    %85 = vmatprep.subr.mxu0 0.0
    %86 = vmatpush1.msra.mxu0 0.0
    %87 = vmatprep.subr.mxu0 0.0
    %88 = vmatpush1.msra.mxu0 0.0
    %89 = vmatprep.subr.mxu0 0.0
    %90 = vmatpush1.msra.mxu0 0.0
    %91 = vmatprep.subr.mxu0 0.0
    %92 = vmatpush1.msra.mxu0 0.0
    %93 = vmatprep.subr.mxu0 0.0
    %94 = vmatpush1.msra.mxu0 0.0
    %95 = vmatprep.subr.mxu0 0.0
    %96 = vmatpush1.msra.mxu0 0.0
    %97 = vmatprep.subr.mxu0 0.0
    %98 = vmatpush1.msra.mxu0 0.0
    %99 = vmatprep.subr.mxu0 0.0
    %100 = vmatpush1.msra.mxu0 0.0
    %101 = vmatprep.subr.mxu0 0.0
    %102 = vmatpush1.msra.mxu0 0.0
    %103 = vmatprep.subr.mxu0 0.0
    %104 = vmatpush1.msra.mxu0 0.0
    %105 = vmatprep.subr.mxu0 0.0
    %106 = vmatpush1.msra.mxu0 0.0
    %107 = vmatprep.subr.mxu0 0.0
    %108 = vmatpush1.msra.mxu0 0.0
    %109 = vmatprep.subr.mxu0 0.0
    %110 = vmatpush1.msra.mxu0 0.0
    %111 = vmatprep.subr.mxu0 0.0
    %112 = vmatpush1.msra.mxu0 0.0
    %113 = vmatprep.subr.mxu0 0.0
    %114 = vmatpush1.msra.mxu0 0.0
    %115 = vmatprep.subr.mxu0 0.0
    %116 = vmatpush1.msra.mxu0 0.0
    %117 = vmatprep.mubr.f32.mxu0 0.0
    %118 = vmatmul.mubr.f32.gmra.mrb[0].mxu0 %v48
    %v119 = vpop.f32.mrb[0].mxu0
    %v120 = vadd.f32 0.0, %v119
    %v121 = vpop.f32.mrb[0].mxu0
    %122 = vmatprep.mubr.f32.mxu0 0.0
    %123 = vmatmul.mubr.f32.gmra.mrb[0].mxu0 %v51
    %v124 = vpop.f32.mrb[0].mxu0
    %v125 = vadd.f32 0.0, %v124
    %v126 = vpop.f32.mrb[0].mxu0
    %127 = vdwg.mxu0
    %v128 = vtanh.pop %v120
    %v129 = vtanh.pop %v125
    %v130 = vmul.f32 %v128, 0.5
    %v131 = vmul.f32 %v129, 0.5
    %v132 = vadd.f32 %v130, 0.5
    %v133 = vadd.f32 %v131, 0.5
    %134 = vst [vmem:[#allocation7] sm:$0xff] %v132
    %135 = vst [vmem:[#allocation7 + $0x8] sm:$0xff] %v133
    // Predicated region
    $region18: #{tpu_custom_call.1} parent=1 // pred_check
      _
    $region19: #{tpu_custom_call.1} parent=1 // pred_check_branch
      %137 = sbr.rel (0) target = $region21
    $region20: #{tpu_custom_call.1} parent=1 // pred_region
      %s139 = ssub.s32 256, 128
      %140 = vsyncadd [#allocation4], %s139
      %s141 = sshll.u32 [#allocation7], 4
      %s142 = int_to_ptr.vmem [resolvable:$true] %s141
      %147 = dma.vmem_to_hbm [thread:$0]  %s142, 128, %s2, [#allocation4], 128, 128, 8
    $region21: #{tpu_custom_call.1} parent=1 // pred_fallthru
      _
    // Predicated region
    $region22: #{tpu_custom_call.1} parent=1 // pred_check
      _
    $region23: #{tpu_custom_call.1} parent=1 // pred_check_branch
      %149 = sbr.rel (0) target = $region25
    $region24: #{tpu_custom_call.1} parent=1 // pred_region
      %150 = dma.done [#allocation4], 256
    $region25: #{tpu_custom_call.1} parent=1 // pred_fallthru
      _
    %151 = vsyncpa [#allocation3], 1
    %152 = vsyncpa [#allocation6], 1
    %153 = vsyncpa [#allocation4], 1

</llo_original>
